<compile_context>
chip_gen: v5e
topology: v5e:2x2
jax: 0.10.0
libtpu: 0.0.40
codegen_flags: <defaults>
</compile_context>

<pallas_src>
import functools

import jax
import jax.numpy as jnp
from jax import lax
from jax.experimental import pallas as pl
from jax.experimental.pallas import tpu as pltpu


def reward_shaper_kernel(x_ref, p_ref, out_ref, *, chunk=1024):
    """out[o, :] = b[o] + sum_k W[o, k] * x[k, :]  (unrolled VPU FMAs).

    x_ref:   (in_dim, tb) VMEM     feature-major input tile (lane = batch)
    p_ref:   (in_dim*out_dim + out_dim,) SMEM   flat [W.T row-major | bias]
    out_ref: (out_dim, tb) VMEM    feature-major output tile
    """
    in_dim, tb = x_ref.shape
    out_dim = out_ref.shape[0]
    n_w = in_dim * out_dim

    # Static chunking of the lane (batch) axis keeps the live vreg set small
    # even for very wide tiles.  Falls back to a single pass for small /
    # non-divisible tiles (the no-grid path).
    ch = chunk if (tb >= chunk and tb % chunk == 0) else tb
    n_chunks = tb // ch

    def do_chunk(off):
        # Bias as the accumulator seed: one scalar->vector broadcast per row.
        accs = [jnp.full((1, ch), p_ref[n_w + o], dtype=jnp.float32)
                for o in range(out_dim)]
        # Unrolled K = in_dim (=6) FMAs per output row, sharing each x row.
        for k in range(in_dim):
            xk = x_ref[k:k + 1, pl.ds(off, ch)]
            if xk.dtype != jnp.float32:
                xk = xk.astype(jnp.float32)
            for o in range(out_dim):
                accs[o] = accs[o] + p_ref[k * out_dim + o] * xk
        # Lane-dense stores (one row per output feature).
        for o in range(out_dim):
            out_ref[o:o + 1, pl.ds(off, ch)] = accs[o].astype(out_ref.dtype)

    if n_chunks == 1:
        do_chunk(0)
    else:
        def body(c, carry):
            do_chunk(pl.multiple_of(c * ch, ch))
            return carry
        lax.fori_loop(0, n_chunks, body, 0, unroll=True)


def pack_params(weight, bias):
    """Pack PyTorch-layout Linear params once (outside the per-call path).

    weight: (out_dim, in_dim), bias: (out_dim,)
      -> flat (in_dim*out_dim + out_dim,), W.T row-major then bias,
         so flat[k*out_dim + o] == weight[o, k] and flat[in_dim*out_dim + o] == bias[o].
    """
    return jnp.concatenate([weight.T.reshape(-1), bias])


def reward_shaper(state, action, params_flat, *, batch_tile=8192, chunk=1024):
    """state: (B, Ds), action: (B, Da), params_flat: (Ds+Da+1)*out_dim flat.
    Returns (B, out_dim) — same semantics as the PyTorch module."""
    B, Ds = state.shape
    Ba, Da = action.shape
    assert B == Ba
    in_dim = Ds + Da
    out_dim = params_flat.shape[0] // (in_dim + 1)
    assert params_flat.shape[0] == in_dim * out_dim + out_dim

    # Feature-major (lane-dense) layout: (in_dim, B).
    # TODO(synk): in a real pipeline the producer should emit feature-major
    # activations directly so this transpose/concat is not an extra HBM pass.
    x = jnp.concatenate([state, action], axis=1).T

    kern = functools.partial(reward_shaper_kernel, chunk=chunk)
    smem_spec = pl.BlockSpec(memory_space=pltpu.MemorySpace.SMEM)

    itemsize = jnp.dtype(state.dtype).itemsize
    cost = pl.CostEstimate(
        flops=2 * B * in_dim * out_dim + B * out_dim,
        transcendentals=0,
        bytes_accessed=(in_dim * B + out_dim * B) * itemsize
                       + params_flat.shape[0] * 4,
    )

    if B > batch_tile:
        # Gridded path: big row tiles, batch padded to a tile multiple.
        n_tiles = pl.cdiv(B, batch_tile)
        bp = n_tiles * batch_tile
        if bp != B:
            x = jnp.pad(x, ((0, 0), (0, bp - B)))
        out_t = pl.pallas_call(
            kern,
            out_shape=jax.ShapeDtypeStruct((out_dim, bp), state.dtype),
            grid=(n_tiles,),
            in_specs=[
                pl.BlockSpec((in_dim, batch_tile), lambda i: (0, i)),
                smem_spec,
            ],
            out_specs=pl.BlockSpec((out_dim, batch_tile), lambda i: (0, i)),
            compiler_params=pltpu.CompilerParams(
                dimension_semantics=("parallel",)),
            cost_estimate=cost,
        )(x, params_flat)
        out_t = out_t[:, :B]
    else:
        # Small batch: single shot, whole (tiny) arrays resident in VMEM.
        vmem_spec = pl.BlockSpec(memory_space=pltpu.MemorySpace.VMEM)
        out_t = pl.pallas_call(
            kern,
            out_shape=jax.ShapeDtypeStruct((out_dim, B), state.dtype),
            in_specs=[vmem_spec, smem_spec],
            out_specs=vmem_spec,
            cost_estimate=cost,
        )(x, params_flat)

    # Back to (B, out_dim) for parity with the PyTorch module; a feature-major
    # consumer could take out_t directly and skip this transpose.
    return out_t.T


if __name__ == "__main__":
    input_dim = 6
    output_dim = 2
    state_dim = 4
    action_dim = 2   # state_dim + action_dim == input_dim
    batch = 8

    key = jax.random.PRNGKey(0)
    k_state, k_action, k_w, k_b = jax.random.split(key, 4)

    state = jax.random.normal(k_state, (batch, state_dim), dtype=jnp.float32)
    action = jax.random.normal(k_action, (batch, action_dim), dtype=jnp.float32)

    # Deterministic PyTorch-style Linear init: U(-1/sqrt(in_dim), 1/sqrt(in_dim)).
    bound = 1.0 / (input_dim ** 0.5)
    weight = jax.random.uniform(k_w, (output_dim, input_dim),
                                minval=-bound, maxval=bound, dtype=jnp.float32)
    bias = jax.random.uniform(k_b, (output_dim,),
                              minval=-bound, maxval=bound, dtype=jnp.float32)

    # Params are packed once at init (not per forward call).
    params = pack_params(weight, bias)

    # --- small-batch path (no grid, whole-VMEM) ---
    out = jax.block_until_ready(reward_shaper(state, action, params))
    ref = jnp.concatenate([state, action], axis=1) @ weight.T + bias
    assert out.shape == (batch, output_dim)
    assert jnp.allclose(out, ref, atol=1e-5, rtol=1e-5)

    # --- large, non-divisible batch (gridded + padded last tile) ---
    big_b = 20000
    kb1, kb2 = jax.random.split(jax.random.PRNGKey(1))
    big_state = jax.random.normal(kb1, (big_b, state_dim), dtype=jnp.float32)
    big_action = jax.random.normal(kb2, (big_b, action_dim), dtype=jnp.float32)

    big_out = jax.block_until_ready(reward_shaper(big_state, big_action, params))
    big_ref = jnp.concatenate([big_state, big_action], axis=1) @ weight.T + bias
    assert big_out.shape == (big_b, output_dim)
    assert jnp.allclose(big_out, big_ref, atol=1e-4, rtol=1e-4)

    print("KERNEL_OK")
</pallas_src>

<mosaic_0001>
module attributes {stable_mosaic.version = 11 : i64} {
  func.func @reward_shaper_kernel(%arg0: memref<6x8xf32, #tpu.memory_space<vmem>>, %arg1: memref<14xf32, #tpu.memory_space<smem>>, %arg2: memref<2x8xf32, #tpu.memory_space<vmem>>) attributes {dimension_semantics = [], scalar_prefetch = 0 : i64, scratch_operands = 0 : i64, tpu.core_type = #tpu.core_type<tc>} {
    %c12 = arith.constant 12 : index
    %0 = memref.load %arg1[%c12] : memref<14xf32, #tpu.memory_space<smem>>
    %1 = vector.broadcast %0 : f32 to vector<1x8xf32>
    %c13 = arith.constant 13 : index
    %2 = memref.load %arg1[%c13] : memref<14xf32, #tpu.memory_space<smem>>
    %3 = vector.broadcast %2 : f32 to vector<1x8xf32>
    %c0 = arith.constant 0 : index
    %c0_0 = arith.constant 0 : index
    %4 = vector.load %arg0[%c0, %c0_0] : memref<6x8xf32, #tpu.memory_space<vmem>>, vector<1x8xf32>
    %c0_1 = arith.constant 0 : index
    %5 = memref.load %arg1[%c0_1] : memref<14xf32, #tpu.memory_space<smem>>
    %6 = vector.broadcast %5 : f32 to vector<1x8xf32>
    %7 = arith.mulf %6, %4 : vector<1x8xf32>
    %8 = arith.addf %1, %7 : vector<1x8xf32>
    %c1 = arith.constant 1 : index
    %9 = memref.load %arg1[%c1] : memref<14xf32, #tpu.memory_space<smem>>
    %10 = vector.broadcast %9 : f32 to vector<1x8xf32>
    %11 = arith.mulf %10, %4 : vector<1x8xf32>
    %12 = arith.addf %3, %11 : vector<1x8xf32>
    %c1_2 = arith.constant 1 : index
    %c0_3 = arith.constant 0 : index
    %13 = vector.load %arg0[%c1_2, %c0_3] : memref<6x8xf32, #tpu.memory_space<vmem>>, vector<1x8xf32>
    %c2 = arith.constant 2 : index
    %14 = memref.load %arg1[%c2] : memref<14xf32, #tpu.memory_space<smem>>
    %15 = vector.broadcast %14 : f32 to vector<1x8xf32>
    %16 = arith.mulf %15, %13 : vector<1x8xf32>
    %17 = arith.addf %8, %16 : vector<1x8xf32>
    %c3 = arith.constant 3 : index
    %18 = memref.load %arg1[%c3] : memref<14xf32, #tpu.memory_space<smem>>
    %19 = vector.broadcast %18 : f32 to vector<1x8xf32>
    %20 = arith.mulf %19, %13 : vector<1x8xf32>
    %21 = arith.addf %12, %20 : vector<1x8xf32>
    %c2_4 = arith.constant 2 : index
    %c0_5 = arith.constant 0 : index
    %22 = vector.load %arg0[%c2_4, %c0_5] : memref<6x8xf32, #tpu.memory_space<vmem>>, vector<1x8xf32>
    %c4 = arith.constant 4 : index
    %23 = memref.load %arg1[%c4] : memref<14xf32, #tpu.memory_space<smem>>
    %24 = vector.broadcast %23 : f32 to vector<1x8xf32>
    %25 = arith.mulf %24, %22 : vector<1x8xf32>
    %26 = arith.addf %17, %25 : vector<1x8xf32>
    %c5 = arith.constant 5 : index
    %27 = memref.load %arg1[%c5] : memref<14xf32, #tpu.memory_space<smem>>
    %28 = vector.broadcast %27 : f32 to vector<1x8xf32>
    %29 = arith.mulf %28, %22 : vector<1x8xf32>
    %30 = arith.addf %21, %29 : vector<1x8xf32>
    %c3_6 = arith.constant 3 : index
    %c0_7 = arith.constant 0 : index
    %31 = vector.load %arg0[%c3_6, %c0_7] : memref<6x8xf32, #tpu.memory_space<vmem>>, vector<1x8xf32>
    %c6 = arith.constant 6 : index
    %32 = memref.load %arg1[%c6] : memref<14xf32, #tpu.memory_space<smem>>
    %33 = vector.broadcast %32 : f32 to vector<1x8xf32>
    %34 = arith.mulf %33, %31 : vector<1x8xf32>
    %35 = arith.addf %26, %34 : vector<1x8xf32>
    %c7 = arith.constant 7 : index
    %36 = memref.load %arg1[%c7] : memref<14xf32, #tpu.memory_space<smem>>
    %37 = vector.broadcast %36 : f32 to vector<1x8xf32>
    %38 = arith.mulf %37, %31 : vector<1x8xf32>
    %39 = arith.addf %30, %38 : vector<1x8xf32>
    %c4_8 = arith.constant 4 : index
    %c0_9 = arith.constant 0 : index
    %40 = vector.load %arg0[%c4_8, %c0_9] : memref<6x8xf32, #tpu.memory_space<vmem>>, vector<1x8xf32>
    %c8 = arith.constant 8 : index
    %41 = memref.load %arg1[%c8] : memref<14xf32, #tpu.memory_space<smem>>
    %42 = vector.broadcast %41 : f32 to vector<1x8xf32>
    %43 = arith.mulf %42, %40 : vector<1x8xf32>
    %44 = arith.addf %35, %43 : vector<1x8xf32>
    %c9 = arith.constant 9 : index
    %45 = memref.load %arg1[%c9] : memref<14xf32, #tpu.memory_space<smem>>
    %46 = vector.broadcast %45 : f32 to vector<1x8xf32>
    %47 = arith.mulf %46, %40 : vector<1x8xf32>
    %48 = arith.addf %39, %47 : vector<1x8xf32>
    %c5_10 = arith.constant 5 : index
    %c0_11 = arith.constant 0 : index
    %49 = vector.load %arg0[%c5_10, %c0_11] : memref<6x8xf32, #tpu.memory_space<vmem>>, vector<1x8xf32>
    %c10 = arith.constant 10 : index
    %50 = memref.load %arg1[%c10] : memref<14xf32, #tpu.memory_space<smem>>
    %51 = vector.broadcast %50 : f32 to vector<1x8xf32>
    %52 = arith.mulf %51, %49 : vector<1x8xf32>
    %53 = arith.addf %44, %52 : vector<1x8xf32>
    %c11 = arith.constant 11 : index
    %54 = memref.load %arg1[%c11] : memref<14xf32, #tpu.memory_space<smem>>
    %55 = vector.broadcast %54 : f32 to vector<1x8xf32>
    %56 = arith.mulf %55, %49 : vector<1x8xf32>
    %57 = arith.addf %48, %56 : vector<1x8xf32>
    %c0_12 = arith.constant 0 : index
    %c0_13 = arith.constant 0 : index
    %58 = vector.load %arg2[%c0_12, %c0_13] : memref<2x8xf32, #tpu.memory_space<vmem>>, vector<1x8xf32>
    tpu.vector_store %arg2[%c0_12, %c0_13], %53 {strides = array<i32>} : memref<2x8xf32, #tpu.memory_space<vmem>>, vector<1x8xf32>,
    %c1_14 = arith.constant 1 : index
    %c0_15 = arith.constant 0 : index
    %59 = vector.load %arg2[%c1_14, %c0_15] : memref<2x8xf32, #tpu.memory_space<vmem>>, vector<1x8xf32>
    tpu.vector_store %arg2[%c1_14, %c0_15], %57 {strides = array<i32>} : memref<2x8xf32, #tpu.memory_space<vmem>>, vector<1x8xf32>,
    return
  }
}

</mosaic_0001>

<llo_original>
// kernel: tpu_custom_call.1
$region0: #{tpu_custom_call.1}
  #allocation0 [shape = 'u32[]', space=smem, size = 0x4, offset = 0x4, fixed_abs, tag = 'smem constant byte address 0x4 - core index']
  #allocation1 [shape = 'u32[72,128]{1,0:T(1,128)}', space=vmem, size = 0x9000, scoped, tag = 'internal scratch']
  %s0 = inlined_call_operand.hbm [shape: f32[6,8], index: 0, kind: input, shape index: {}]
  %s1 = inlined_call_operand.hbm [shape: f32[14], index: 1, kind: input, shape index: {}]
  %s2 = inlined_call_operand.hbm [shape: f32[2,8], index: 2, kind: output, shape index: {}]
  %s3 = sld [smem:[#allocation0]]
  $region26: #{tpu_custom_call.1} parent=0
    _
  %s5 = ssub.s32 1, %s3
  %s6 = scalar_select 0, %s5, %s3
  $region1: #{tpu_custom_call.1} parent=0
    #allocation2 [shape = 'u8[4096]{0}', space=vmem, size = 0x1000, scoped, tag = 'input window, operand 0, single buffered']
    #allocation3 [shape = 's32[1]{0}', space=sflag, size = 0x4, scoped, tag = 'scoped memory for tpu_custom_call.1']
    #allocation4 [shape = 's32[1]{0}', space=sflag, size = 0x4, scoped, tag = 'scoped memory for tpu_custom_call.1']
    #allocation5 [shape = 's32[1]{0}', space=sflag, size = 0x4, scoped, tag = 'scoped memory for tpu_custom_call.1']
    #allocation6 [shape = 'u8[512]{0}', space=smem, size = 0x200, scoped, tag = 'input window, operand 1, single buffered']
    #allocation7 [shape = 'u8[1024]{0}', space=vmem, size = 0x400, scoped, tag = 'output window, operand 0, single buffered']
    %7 = vsyncpa [#allocation3], 0
    %8 = vsyncpa [#allocation5], 0
    %9 = vsyncpa [#allocation4], 0
    // Predicated region
    $region2: #{tpu_custom_call.1} parent=1 // pred_check
      _
    $region3: #{tpu_custom_call.1} parent=1 // pred_check_branch
      %11 = sbr.rel (0) target = $region5
    $region4: #{tpu_custom_call.1} parent=1 // pred_region
      %13 = vsyncadd [#allocation3], 0
      %s15 = sshll.u32 %s0, 4
      %s16 = int_to_ptr.hbm [resolvable:$true] %s15
      %s17 = sshll.u32 [#allocation2], 4
      %s18 = int_to_ptr.vmem [resolvable:$true] %s17
      %20 = dma.hbm_to_vmem [thread:$0]  %s16, 128, %s18, [#allocation3]
    $region5: #{tpu_custom_call.1} parent=1 // pred_fallthru
      _
    // Predicated region
    $region6: #{tpu_custom_call.1} parent=1 // pred_check
      _
    $region7: #{tpu_custom_call.1} parent=1 // pred_check_branch
      %22 = sbr.rel (0) target = $region9
    $region8: #{tpu_custom_call.1} parent=1 // pred_region
      %24 = vsyncadd [#allocation5], 0
      %s26 = sshll.u32 %s1, 4
      %s27 = int_to_ptr.hbm [resolvable:$true] %s26
      %29 = dma.hbm_to_smem %s27, 16, [#allocation6], [#allocation5]
    $region9: #{tpu_custom_call.1} parent=1 // pred_fallthru
      _
    // Predicated region
    $region10: #{tpu_custom_call.1} parent=1 // pred_check
      _
    $region11: #{tpu_custom_call.1} parent=1 // pred_check_branch
      %31 = sbr.rel (0) target = $region13
    $region12: #{tpu_custom_call.1} parent=1 // pred_region
      %33 = dma.done [#allocation3], 128
    $region13: #{tpu_custom_call.1} parent=1 // pred_fallthru
      _
    // Predicated region
    $region14: #{tpu_custom_call.1} parent=1 // pred_check
      _
    $region15: #{tpu_custom_call.1} parent=1 // pred_check_branch
      %35 = sbr.rel (0) target = $region17
    $region16: #{tpu_custom_call.1} parent=1 // pred_region
      %37 = dma.done [#allocation5], 16
    $region17: #{tpu_custom_call.1} parent=1 // pred_fallthru
      _
    %38 = sfence
    %s39 = sld [smem:[#allocation6 + $0xc]]
    %v40 = vstv %s39
    %s41 = sld [smem:[#allocation6 + $0xd]]
    %v42 = vstv %s41
    %v43 = vld [vmem:[#allocation2] sm:$0x1]
    %s44 = sld [smem:[#allocation6]]
    %v45 = vstv %s44
    %v46 = vmul.f32 %v45, %v43
    %v47 = vadd.f32 %v40, %v46
    %s48 = sld [smem:[#allocation6 + $0x1]]
    %v49 = vstv %s48
    %v50 = vmul.f32 %v49, %v43
    %v51 = vadd.f32 %v42, %v50
    %v52 = vld [vmem:[#allocation2 + $0x1] sm:$0x1]
    %s53 = sld [smem:[#allocation6 + $0x2]]
    %v54 = vstv %s53
    %v55 = vmul.f32 %v54, %v52
    %v56 = vadd.f32 %v47, %v55
    %s57 = sld [smem:[#allocation6 + $0x3]]
    %v58 = vstv %s57
    %v59 = vmul.f32 %v58, %v52
    %v60 = vadd.f32 %v51, %v59
    %v61 = vld [vmem:[#allocation2 + $0x2] sm:$0x1]
    %s62 = sld [smem:[#allocation6 + $0x4]]
    %v63 = vstv %s62
    %v64 = vmul.f32 %v63, %v61
    %v65 = vadd.f32 %v56, %v64
    %s66 = sld [smem:[#allocation6 + $0x5]]
    %v67 = vstv %s66
    %v68 = vmul.f32 %v67, %v61
    %v69 = vadd.f32 %v60, %v68
    %v70 = vld [vmem:[#allocation2 + $0x3] sm:$0x1]
    %s71 = sld [smem:[#allocation6 + $0x6]]
    %v72 = vstv %s71
    %v73 = vmul.f32 %v72, %v70
    %v74 = vadd.f32 %v65, %v73
    %s75 = sld [smem:[#allocation6 + $0x7]]
    %v76 = vstv %s75
    %v77 = vmul.f32 %v76, %v70
    %v78 = vadd.f32 %v69, %v77
    %v79 = vld [vmem:[#allocation2 + $0x4] sm:$0x1]
    %s80 = sld [smem:[#allocation6 + $0x8]]
    %v81 = vstv %s80
    %v82 = vmul.f32 %v81, %v79
    %v83 = vadd.f32 %v74, %v82
    %s84 = sld [smem:[#allocation6 + $0x9]]
    %v85 = vstv %s84
    %v86 = vmul.f32 %v85, %v79
    %v87 = vadd.f32 %v78, %v86
    %v88 = vld [vmem:[#allocation2 + $0x5] sm:$0x1]
    %s89 = sld [smem:[#allocation6 + $0xa]]
    %v90 = vstv %s89
    %v91 = vmul.f32 %v90, %v88
    %v92 = vadd.f32 %v83, %v91
    %s93 = sld [smem:[#allocation6 + $0xb]]
    %v94 = vstv %s93
    %v95 = vmul.f32 %v94, %v88
    %v96 = vadd.f32 %v87, %v95
    %vm97 = vcmask 57344
    %98 = vst.msk [vmem:[#allocation7] sm:$0x1] %vm97, %v92
    %99 = vst.msk [vmem:[#allocation7 + $0x1] sm:$0x1] %vm97, %v96
    // Predicated region
    $region18: #{tpu_custom_call.1} parent=1 // pred_check
      _
    $region19: #{tpu_custom_call.1} parent=1 // pred_check_branch
      %101 = sbr.rel (0) target = $region21
    $region20: #{tpu_custom_call.1} parent=1 // pred_region
      %103 = vsyncadd [#allocation4], 0
      %s105 = sshll.u32 [#allocation7], 4
      %s106 = int_to_ptr.vmem [resolvable:$true] %s105
      %s107 = sshll.u32 %s2, 4
      %s108 = int_to_ptr.hbm [resolvable:$true] %s107
      %110 = dma.vmem_to_hbm [thread:$0]  %s106, 32, %s108, [#allocation4]
    $region21: #{tpu_custom_call.1} parent=1 // pred_fallthru
      _
    // Predicated region
    $region22: #{tpu_custom_call.1} parent=1 // pred_check
      _
    $region23: #{tpu_custom_call.1} parent=1 // pred_check_branch
      %112 = sbr.rel (0) target = $region25
    $region24: #{tpu_custom_call.1} parent=1 // pred_region
      %114 = dma.done [#allocation4], 32
    $region25: #{tpu_custom_call.1} parent=1 // pred_fallthru
      _
    %115 = vsyncpa [#allocation3], 1
    %116 = vsyncpa [#allocation4], 1
    %117 = vsyncpa [#allocation5], 1

</llo_original>
